<compile_context>
chip_gen: v7x
topology: tpu7x:2x2x1
jax: 0.10.0
libtpu: 0.0.40
codegen_flags: <defaults>
</compile_context>

<pallas_src>
import functools

import jax
import jax.numpy as jnp
from jax import lax
from jax.experimental import pallas as pl
from jax.experimental.pallas import tpu as pltpu


# ---------------------------------------------------------------------------
# Hardware queries (best-effort; conservative fallbacks)
# ---------------------------------------------------------------------------
def _vmem_capacity_bytes():
    try:
        info = pltpu.get_tpu_info()
        for name in ("vmem_capacity_bytes", "vmem_bytes", "vmem_size_bytes"):
            v = getattr(info, name, None)
            if v:
                return int(v)
    except Exception:
        pass
    return 64 * 1024 * 1024          # conservative: v7x per-TC VMEM


def _num_tensorcores():
    # Only gates a minor tiling heuristic; default to 1 if unknown.
    try:
        info = pltpu.get_tpu_info()
        for name in ("num_cores", "num_tensorcores", "tensorcore_count",
                     "cores_per_chip"):
            v = getattr(info, name, None)
            if v:
                return int(v)
    except Exception:
        pass
    try:
        return max(1, int(getattr(jax.devices()[0], "num_cores", 1)))
    except Exception:
        return 1


_VMEM_CAP = _vmem_capacity_bytes()
# 128 MiB chips (v5e/v6e): ~56 MiB pipeline budget, 96 MiB scoped limit.
# 64 MiB chips (v7x):      ~28 MiB pipeline budget, 48 MiB scoped limit.
_VMEM_PIPELINE_BUDGET = min((_VMEM_CAP * 7) // 16, 56 * 1024 * 1024)
_VMEM_LIMIT_BYTES = max(min((_VMEM_CAP * 3) // 4, 96 * 1024 * 1024),
                        32 * 1024 * 1024)
_NUM_CORES = _num_tensorcores()
_SMALL_INPUT_BYTES = 1 << 20         # below this, plain jnp wins


# ---------------------------------------------------------------------------
# Kernel: exact two-pass mean / unbiased std, chunked over N so temporaries
# stay (tb, chunk, tf)-sized instead of (tb, N, tf)-sized f32 buffers.
# ---------------------------------------------------------------------------
def _meanstd_kernel(x_ref, mean_ref, std_ref, *, chunk):
    tb, n, tf = x_ref.shape
    n_full = n // chunk
    rem = n % chunk
    inv_n = jnp.float32(1.0 / n)

    def chunk_f32(start, size):                  # static slice (Python ints)
        return x_ref[:, start:start + size, :].astype(jnp.float32)

    # ---- pass 1: sum over N (sublane reduce) ------------------------------
    s = jnp.zeros((tb, tf), jnp.float32)
    if n_full > 0:
        if n_full <= 16:
            for c in range(n_full):              # static, fully unrolled
                s = s + jnp.sum(chunk_f32(c * chunk, chunk), axis=1)
        else:
            def sum_body(c, acc):
                start = pl.multiple_of(c * chunk, chunk)
                blk = x_ref[:, pl.ds(start, chunk), :].astype(jnp.float32)
                return acc + jnp.sum(blk, axis=1)
            s = lax.fori_loop(0, n_full, sum_body, s)
    if rem:
        s = s + jnp.sum(chunk_f32(n_full * chunk, rem), axis=1)
    mean = s * inv_n

    # ---- pass 2: sum of squared deviations (true two-pass, no cancellation)
    mu = mean[:, None, :]
    ss = jnp.zeros((tb, tf), jnp.float32)
    if n_full > 0:
        if n_full <= 16:
            for c in range(n_full):
                d = chunk_f32(c * chunk, chunk) - mu
                ss = ss + jnp.sum(d * d, axis=1)
        else:
            def ss_body(c, acc):
                start = pl.multiple_of(c * chunk, chunk)
                d = x_ref[:, pl.ds(start, chunk), :].astype(jnp.float32) - mu
                return acc + jnp.sum(d * d, axis=1)
            ss = lax.fori_loop(0, n_full, ss_body, ss)
    if rem:
        d = chunk_f32(n_full * chunk, rem) - mu
        ss = ss + jnp.sum(d * d, axis=1)

    # Unbiased variance (ddof=1), matching torch.std default.
    # N == 1 -> 0/0 -> NaN, same as torch.
    var = ss / jnp.float32(n - 1)
    mean_ref[...] = mean.astype(mean_ref.dtype)
    std_ref[...] = jnp.sqrt(var).astype(std_ref.dtype)


# ---------------------------------------------------------------------------
# Tile selection from a VMEM budget
# ---------------------------------------------------------------------------
def _divisors(n):
    return [d for d in range(1, n + 1) if n % d == 0]


def _sublane_pack(itemsize):
    # Rows per 32-bit sublane group: f32 -> 8, bf16/f16 -> 16, int8/fp8 -> 32.
    return max(8, 32 // itemsize)


def _round_up(x, m):
    return ((x + m - 1) // m) * m


def _block_bytes(tb, n, tf, x_isz, out_isz, chunk):
    n_pad = _round_up(n, _sublane_pack(x_isz))           # VMEM sublane padding
    in_tile = tb * n_pad * tf * x_isz
    # Chunked two-pass: one (tb, chunk, tf) f32 temp (+ its square) live at a
    # time, plus (tb, tf) f32 accumulators / mean / diff rows.
    temps = 2 * tb * min(chunk, n_pad) * tf * 4 + 4 * tb * tf * 4
    out_tiles = 2 * 2 * _round_up(tb, 8) * tf * out_isz  # 2 outs, double-buffered
    return 2 * in_tile + temps + out_tiles                # input double-buffered


def _pick_tiles(B, N, F, x_isz, out_isz, chunk, budget_bytes, num_cores):
    tf_cands = sorted((d for d in _divisors(F) if d % 128 == 0), reverse=True)
    if not tf_cands:
        return None
    # Output block is (tb, tf): its sublane dim must be a multiple of 8 or the
    # full B, so tb candidates are restricted accordingly (the input tile's
    # leading dim has no such restriction, but the output's does).
    tb_cands = sorted({d for d in _divisors(B) if d % 8 == 0} | {B},
                      reverse=True)

    # Prefer tf = F (fully contiguous HBM blocks); shrink tb first; only
    # narrow tf if even the smallest legal tb does not fit.
    tb = tf = None
    for tf_c in tf_cands:
        for tb_c in tb_cands:
            if _block_bytes(tb_c, N, tf_c, x_isz, out_isz, chunk) <= budget_bytes:
                tb, tf = tb_c, tf_c
                break
        if tb is not None:
            break
    if tb is None:
        return None   # not even (tb_min, N, 128) fits -> caller falls back to jnp

    # Give both TensorCores work on multi-core chips by splitting along B
    # (keeps F contiguity); prefer an even number of steps.
    if num_cores >= 2 and (B // tb) * (F // tf) < 2:
        smaller = [d for d in tb_cands if d < tb]
        even = [d for d in smaller if (B // d) % 2 == 0]
        if even:
            tb = even[0]
        elif smaller:
            tb = smaller[0]
    return tb, tf


# ---------------------------------------------------------------------------
# Wrapper
# ---------------------------------------------------------------------------
@functools.partial(jax.jit, static_argnames=("use_pallas",))
def mean_std(x, *, use_pallas=None):
    """x: (B, N, F) -> (mean (B, F), std (B, F)); reduction over dim=1."""
    B, N, F = x.shape
    x_isz = jnp.dtype(x.dtype).itemsize
    out_isz = x_isz
    chunk = _sublane_pack(x_isz)

    pallas_ok = (F % 128 == 0)
    tiles = None
    if pallas_ok:
        tiles = _pick_tiles(B, N, F, x_isz, out_isz, chunk,
                            _VMEM_PIPELINE_BUDGET, _NUM_CORES)
        pallas_ok = tiles is not None

    if use_pallas is None:
        use_pallas = pallas_ok and (x.size * x_isz >= _SMALL_INPUT_BYTES)

    if not use_pallas or not pallas_ok:
        # Tiny inputs, ragged F, or N too large for any legal tile: XLA-fused
        # jnp is faster / the only safe option.
        return jnp.mean(x, axis=1), jnp.std(x, axis=1, ddof=1)

    tb, tf = tiles
    grid = (B // tb, F // tf)

    cost = pl.CostEstimate(
        flops=3 * B * N * F,
        transcendentals=B * F,   # sqrt
        bytes_accessed=B * N * F * x_isz + 2 * B * F * out_isz,
    )

    kernel = functools.partial(_meanstd_kernel, chunk=chunk)
    mean, std = pl.pallas_call(
        kernel,
        out_shape=(
            jax.ShapeDtypeStruct((B, F), x.dtype),
            jax.ShapeDtypeStruct((B, F), x.dtype),
        ),
        grid_spec=pltpu.PrefetchScalarGridSpec(
            num_scalar_prefetch=0,
            grid=grid,
            in_specs=[
                pl.BlockSpec((tb, N, tf), lambda i, j: (i, 0, j)),
            ],
            out_specs=[
                pl.BlockSpec((tb, tf), lambda i, j: (i, j)),
                pl.BlockSpec((tb, tf), lambda i, j: (i, j)),
            ],
        ),
        compiler_params=pltpu.CompilerParams(
            dimension_semantics=("parallel", "parallel"),
            vmem_limit_bytes=_VMEM_LIMIT_BYTES,
        ),
        cost_estimate=cost,
    )(x)
    return mean, std


# ---------------------------------------------------------------------------
# Self-test
# ---------------------------------------------------------------------------
if __name__ == "__main__":
    key = jax.random.PRNGKey(0)

    # Primary: batch=8, ensemble size=8, hidden=256 (full-chunk path).
    # Force the Pallas path (auto-dispatch would pick jnp at this tiny size).
    x = jax.random.normal(key, (8, 8, 256), dtype=jnp.float32)
    mean, std = mean_std(x, use_pallas=True)
    jax.block_until_ready((mean, std))
    assert jnp.allclose(mean, jnp.mean(x, axis=1), atol=1e-5, rtol=1e-5)
    assert jnp.allclose(std, jnp.std(x, axis=1, ddof=1), atol=1e-5, rtol=1e-5)

    # Ragged ensemble size (N=5 -> remainder chunk) and batch not %8 (tb == B),
    # with a nonzero mean to check the two-pass variance stays exact.
    y = 3.0 + 2.0 * jax.random.normal(jax.random.PRNGKey(0), (6, 5, 128),
                                      dtype=jnp.float32)
    m2, s2 = mean_std(y, use_pallas=True)
    jax.block_until_ready((m2, s2))
    assert jnp.allclose(m2, jnp.mean(y, axis=1), atol=1e-5, rtol=1e-5)
    assert jnp.allclose(s2, jnp.std(y, axis=1, ddof=1), atol=1e-5, rtol=1e-5)

    # Auto-dispatch path (tiny input -> jnp fallback).
    m3, s3 = mean_std(x)
    jax.block_until_ready((m3, s3))
    assert jnp.allclose(m3, jnp.mean(x, axis=1), atol=1e-5, rtol=1e-5)
    assert jnp.allclose(s3, jnp.std(x, axis=1, ddof=1), atol=1e-5, rtol=1e-5)

    print("KERNEL_OK")
</pallas_src>

<mosaic_0001>
module attributes {stable_mosaic.version = 11 : i64} {
  func.func @_meanstd_kernel(%arg0: i32, %arg1: i32, %arg2: memref<8x8x256xf32, #tpu.memory_space<vmem>>, %arg3: memref<8x256xf32, #tpu.memory_space<vmem>>, %arg4: memref<8x256xf32, #tpu.memory_space<vmem>>) attributes {dimension_semantics = [#tpu.dimension_semantics<parallel>, #tpu.dimension_semantics<parallel>], iteration_bounds = array<i64: 1, 1>, scalar_prefetch = 0 : i64, scratch_operands = 0 : i64, tpu.core_type = #tpu.core_type<tc>, window_params = [{transform_indices = @transform_0, window_bounds = array<i64: 8, 8, 256>}, {transform_indices = @transform_1, window_bounds = array<i64: 8, 256>}, {transform_indices = @transform_2, window_bounds = array<i64: 8, 256>}]} {
    %cst = arith.constant 0.000000e+00 : f32
    %0 = vector.broadcast %cst : f32 to vector<8x256xf32>
    %c0 = arith.constant 0 : index
    %c0_0 = arith.constant 0 : index
    %c0_1 = arith.constant 0 : index
    %1 = vector.load %arg2[%c0, %c0_0, %c0_1] : memref<8x8x256xf32, #tpu.memory_space<vmem>>, vector<8x8x256xf32>
    %cst_2 = arith.constant dense<0.000000e+00> : vector<8x256xf32>
    %2 = vector.multi_reduction <add>, %1, %cst_2 [1] : vector<8x8x256xf32> to vector<8x256xf32>
    %3 = arith.addf %0, %2 : vector<8x256xf32>
    %cst_3 = arith.constant 1.250000e-01 : f32
    %4 = vector.broadcast %cst_3 : f32 to vector<8x256xf32>
    %5 = arith.mulf %3, %4 : vector<8x256xf32>
    %6 = vector.shape_cast %5 : vector<8x256xf32> to vector<8x1x256xf32>
    %cst_4 = arith.constant 0.000000e+00 : f32
    %7 = vector.broadcast %cst_4 : f32 to vector<8x256xf32>
    %c0_5 = arith.constant 0 : index
    %c0_6 = arith.constant 0 : index
    %c0_7 = arith.constant 0 : index
    %8 = vector.load %arg2[%c0_5, %c0_6, %c0_7] : memref<8x8x256xf32, #tpu.memory_space<vmem>>, vector<8x8x256xf32>
    %9 = vector.broadcast %6 : vector<8x1x256xf32> to vector<8x8x256xf32>
    %10 = arith.subf %8, %9 : vector<8x8x256xf32>
    %11 = arith.mulf %10, %10 : vector<8x8x256xf32>
    %cst_8 = arith.constant dense<0.000000e+00> : vector<8x256xf32>
    %12 = vector.multi_reduction <add>, %11, %cst_8 [1] : vector<8x8x256xf32> to vector<8x256xf32>
    %13 = arith.addf %7, %12 : vector<8x256xf32>
    %cst_9 = arith.constant 7.000000e+00 : f32
    %14 = vector.broadcast %cst_9 : f32 to vector<8x256xf32>
    %15 = arith.divf %13, %14 : vector<8x256xf32>
    %c0_10 = arith.constant 0 : index
    %c0_11 = arith.constant 0 : index
    %16 = vector.load %arg3[%c0_10, %c0_11] : memref<8x256xf32, #tpu.memory_space<vmem>>, vector<8x256xf32>
    tpu.vector_store %arg3[%c0_10, %c0_11], %5 {strides = array<i32>} : memref<8x256xf32, #tpu.memory_space<vmem>>, vector<8x256xf32>,
    %17 = math.sqrt %15 : vector<8x256xf32>
    %c0_12 = arith.constant 0 : index
    %c0_13 = arith.constant 0 : index
    %18 = vector.load %arg4[%c0_12, %c0_13] : memref<8x256xf32, #tpu.memory_space<vmem>>, vector<8x256xf32>
    tpu.vector_store %arg4[%c0_12, %c0_13], %17 {strides = array<i32>} : memref<8x256xf32, #tpu.memory_space<vmem>>, vector<8x256xf32>,
    return
  }
  func.func @transform_0(%arg0: i32, %arg1: i32) -> (i32, i32, i32) {
    %c0_i32 = arith.constant 0 : i32
    %c0_i32_0 = arith.constant 0 : i32
    return %arg0, %c0_i32, %arg1 : i32, i32, i32
  }
  func.func @transform_1(%arg0: i32, %arg1: i32) -> (i32, i32) {
    %c0_i32 = arith.constant 0 : i32
    return %arg0, %arg1 : i32, i32
  }
  func.func @transform_2(%arg0: i32, %arg1: i32) -> (i32, i32) {
    %c0_i32 = arith.constant 0 : i32
    return %arg0, %arg1 : i32, i32
  }
}

</mosaic_0001>

<llo_original>
// kernel: mean_std.1
$region0: #{mean_std.1}
  #allocation0 [shape = 'u32[]', space=smem, size = 0x4, offset = 0x4, fixed_abs, tag = 'smem constant byte address 0x4 - core index']
  #allocation1 [shape = 'u32[144,128]{1,0:T(1,128)}', space=vmem, size = 0x12000, scoped, tag = 'internal scratch']
  %s0 = inlined_call_operand.hbm [shape: f32[8,8,256], index: 0, kind: input, shape index: {}]
  %s1 = inlined_call_operand.hbm [shape: f32[8,256], index: 1, kind: output, shape index: {0}]
  %s2 = inlined_call_operand.hbm [shape: f32[8,256], index: 2, kind: output, shape index: {1}]
  %3 = xla_tuple %s1, %s2
  %s4 = sld [smem:[#allocation0]]
  $region26: #{mean_std.1} parent=0
    _
  %s6 = ssub.s32 1, %s4
  %s7 = scalar_select 0, %s6, %s4
  $region1: #{mean_std.1} parent=0
    #allocation2 [shape = 'u8[65536]{0}', space=vmem, size = 0x10000, scoped, tag = 'input window, operand 0, single buffered']
    #allocation3 [shape = 's32[1]{0}', space=sflag, size = 0x4, scoped, tag = 'scoped memory for mean_std.1']
    #allocation4 [shape = 's32[1]{0}', space=sflag, size = 0x4, scoped, tag = 'scoped memory for mean_std.1']
    #allocation5 [shape = 'u8[8192]{0}', space=vmem, size = 0x2000, scoped, tag = 'output window, operand 0, single buffered']
    #allocation6 [shape = 'u8[8192]{0}', space=vmem, size = 0x2000, scoped, tag = 'output window, operand 1, single buffered']
    #allocation7 [shape = 's32[1]{0}', space=sflag, size = 0x4, scoped, tag = 'scoped memory for mean_std.1']
    %8 = vsyncpa [#allocation3], 0
    %9 = vsyncpa [#allocation4], 0
    %10 = vsyncpa [#allocation7], 0
    // Predicated region
    $region2: #{mean_std.1} parent=1 // pred_check
      _
    $region3: #{mean_std.1} parent=1 // pred_check_branch
      %12 = sbr.rel (0) target = $region5
    $region4: #{mean_std.1} parent=1 // pred_region
      %s14 = ssub.s32 2048, 2048
      %15 = vsyncadd [#allocation3], %s14
      %s16 = sshll.u32 [#allocation2], 4
      %s17 = int_to_ptr.vmem [resolvable:$true] %s16
      %22 = dma.hbm_to_vmem [thread:$0]  %s0, 2048, %s17, [#allocation3], 256, 256, 16
    $region5: #{mean_std.1} parent=1 // pred_fallthru
      _
    // Predicated region
    $region6: #{mean_std.1} parent=1 // pred_check
      _
    $region7: #{mean_std.1} parent=1 // pred_check_branch
      %24 = sbr.rel (0) target = $region9
    $region8: #{mean_std.1} parent=1 // pred_region
      %25 = dma.done [#allocation3], 2048
    $region9: #{mean_std.1} parent=1 // pred_fallthru
      _
    %v26 = vld [vmem:[#allocation2] sm:$0xff]
    %v27 = vld [vmem:[#allocation2 + $0x8] sm:$0xff]
    %v28 = vld [vmem:[#allocation2 + $0x10] sm:$0xff]
    %v29 = vld [vmem:[#allocation2 + $0x18] sm:$0xff]
    %v30 = vld [vmem:[#allocation2 + $0x20] sm:$0xff]
    %v31 = vld [vmem:[#allocation2 + $0x28] sm:$0xff]
    %v32 = vld [vmem:[#allocation2 + $0x30] sm:$0xff]
    %v33 = vld [vmem:[#allocation2 + $0x38] sm:$0xff]
    %v34 = vld [vmem:[#allocation2 + $0x40] sm:$0xff]
    %v35 = vld [vmem:[#allocation2 + $0x48] sm:$0xff]
    %v36 = vld [vmem:[#allocation2 + $0x50] sm:$0xff]
    %v37 = vld [vmem:[#allocation2 + $0x58] sm:$0xff]
    %v38 = vld [vmem:[#allocation2 + $0x60] sm:$0xff]
    %v39 = vld [vmem:[#allocation2 + $0x68] sm:$0xff]
    %v40 = vld [vmem:[#allocation2 + $0x70] sm:$0xff]
    %v41 = vld [vmem:[#allocation2 + $0x78] sm:$0xff]
    %v42 = vrot.slane %v26, 4
    %v43 = vadd.f32 %v26, %v42
    %v44 = vrot.slane %v43, 2
    %v45 = vadd.f32 %v43, %v44
    %v46 = vrot.slane %v45, 1
    %v47 = vadd.f32 %v45, %v46
    %v48 = vrot.slane %v27, 4
    %v49 = vadd.f32 %v27, %v48
    %v50 = vrot.slane %v49, 2
    %v51 = vadd.f32 %v49, %v50
    %v52 = vrot.slane %v51, 1
    %v53 = vadd.f32 %v51, %v52
    %v54 = vrot.slane %v28, 4
    %v55 = vadd.f32 %v28, %v54
    %v56 = vrot.slane %v55, 2
    %v57 = vadd.f32 %v55, %v56
    %v58 = vrot.slane %v57, 1
    %v59 = vadd.f32 %v57, %v58
    %v60 = vrot.slane %v29, 4
    %v61 = vadd.f32 %v29, %v60
    %v62 = vrot.slane %v61, 2
    %v63 = vadd.f32 %v61, %v62
    %v64 = vrot.slane %v63, 1
    %v65 = vadd.f32 %v63, %v64
    %v66 = vrot.slane %v30, 4
    %v67 = vadd.f32 %v30, %v66
    %v68 = vrot.slane %v67, 2
    %v69 = vadd.f32 %v67, %v68
    %v70 = vrot.slane %v69, 1
    %v71 = vadd.f32 %v69, %v70
    %v72 = vrot.slane %v31, 4
    %v73 = vadd.f32 %v31, %v72
    %v74 = vrot.slane %v73, 2
    %v75 = vadd.f32 %v73, %v74
    %v76 = vrot.slane %v75, 1
    %v77 = vadd.f32 %v75, %v76
    %v78 = vrot.slane %v32, 4
    %v79 = vadd.f32 %v32, %v78
    %v80 = vrot.slane %v79, 2
    %v81 = vadd.f32 %v79, %v80
    %v82 = vrot.slane %v81, 1
    %v83 = vadd.f32 %v81, %v82
    %v84 = vrot.slane %v33, 4
    %v85 = vadd.f32 %v33, %v84
    %v86 = vrot.slane %v85, 2
    %v87 = vadd.f32 %v85, %v86
    %v88 = vrot.slane %v87, 1
    %v89 = vadd.f32 %v87, %v88
    %v90 = vrot.slane %v34, 4
    %v91 = vadd.f32 %v34, %v90
    %v92 = vrot.slane %v91, 2
    %v93 = vadd.f32 %v91, %v92
    %v94 = vrot.slane %v93, 1
    %v95 = vadd.f32 %v93, %v94
    %v96 = vrot.slane %v35, 4
    %v97 = vadd.f32 %v35, %v96
    %v98 = vrot.slane %v97, 2
    %v99 = vadd.f32 %v97, %v98
    %v100 = vrot.slane %v99, 1
    %v101 = vadd.f32 %v99, %v100
    %v102 = vrot.slane %v36, 4
    %v103 = vadd.f32 %v36, %v102
    %v104 = vrot.slane %v103, 2
    %v105 = vadd.f32 %v103, %v104
    %v106 = vrot.slane %v105, 1
    %v107 = vadd.f32 %v105, %v106
    %v108 = vrot.slane %v37, 4
    %v109 = vadd.f32 %v37, %v108
    %v110 = vrot.slane %v109, 2
    %v111 = vadd.f32 %v109, %v110
    %v112 = vrot.slane %v111, 1
    %v113 = vadd.f32 %v111, %v112
    %v114 = vrot.slane %v38, 4
    %v115 = vadd.f32 %v38, %v114
    %v116 = vrot.slane %v115, 2
    %v117 = vadd.f32 %v115, %v116
    %v118 = vrot.slane %v117, 1
    %v119 = vadd.f32 %v117, %v118
    %v120 = vrot.slane %v39, 4
    %v121 = vadd.f32 %v39, %v120
    %v122 = vrot.slane %v121, 2
    %v123 = vadd.f32 %v121, %v122
    %v124 = vrot.slane %v123, 1
    %v125 = vadd.f32 %v123, %v124
    %v126 = vrot.slane %v40, 4
    %v127 = vadd.f32 %v40, %v126
    %v128 = vrot.slane %v127, 2
    %v129 = vadd.f32 %v127, %v128
    %v130 = vrot.slane %v129, 1
    %v131 = vadd.f32 %v129, %v130
    %v132 = vrot.slane %v41, 4
    %v133 = vadd.f32 %v41, %v132
    %v134 = vrot.slane %v133, 2
    %v135 = vadd.f32 %v133, %v134
    %v136 = vrot.slane %v135, 1
    %v137 = vadd.f32 %v135, %v136
    %v138 = vadd.f32 %v47, 0.0
    %v139 = vadd.f32 %v53, 0.0
    %v140 = vadd.f32 %v59, 0.0
    %v141 = vadd.f32 %v65, 0.0
    %v142 = vadd.f32 %v71, 0.0
    %v143 = vadd.f32 %v77, 0.0
    %v144 = vadd.f32 %v83, 0.0
    %v145 = vadd.f32 %v89, 0.0
    %v146 = vadd.f32 %v95, 0.0
    %v147 = vadd.f32 %v101, 0.0
    %v148 = vadd.f32 %v107, 0.0
    %v149 = vadd.f32 %v113, 0.0
    %v150 = vadd.f32 %v119, 0.0
    %v151 = vadd.f32 %v125, 0.0
    %v152 = vadd.f32 %v131, 0.0
    %v153 = vadd.f32 %v137, 0.0
    %v154 = vmul.f32 %v138, 0.125
    %v155 = vmul.f32 %v139, 0.125
    %v156 = vmul.f32 %v140, 0.125
    %v157 = vmul.f32 %v141, 0.125
    %v158 = vmul.f32 %v142, 0.125
    %v159 = vmul.f32 %v143, 0.125
    %v160 = vmul.f32 %v144, 0.125
    %v161 = vmul.f32 %v145, 0.125
    %v162 = vmul.f32 %v146, 0.125
    %v163 = vmul.f32 %v147, 0.125
    %v164 = vmul.f32 %v148, 0.125
    %v165 = vmul.f32 %v149, 0.125
    %v166 = vmul.f32 %v150, 0.125
    %v167 = vmul.f32 %v151, 0.125
    %v168 = vmul.f32 %v152, 0.125
    %v169 = vmul.f32 %v153, 0.125
    %v170 = vsub.f32 %v26, %v154
    %v171 = vsub.f32 %v27, %v155
    %v172 = vsub.f32 %v28, %v156
    %v173 = vsub.f32 %v29, %v157
    %v174 = vsub.f32 %v30, %v158
    %v175 = vsub.f32 %v31, %v159
    %v176 = vsub.f32 %v32, %v160
    %v177 = vsub.f32 %v33, %v161
    %v178 = vsub.f32 %v34, %v162
    %v179 = vsub.f32 %v35, %v163
    %v180 = vsub.f32 %v36, %v164
    %v181 = vsub.f32 %v37, %v165
    %v182 = vsub.f32 %v38, %v166
    %v183 = vsub.f32 %v39, %v167
    %v184 = vsub.f32 %v40, %v168
    %v185 = vsub.f32 %v41, %v169
    %v186 = vmul.f32 %v170, %v170
    %v187 = vmul.f32 %v171, %v171
    %v188 = vmul.f32 %v172, %v172
    %v189 = vmul.f32 %v173, %v173
    %v190 = vmul.f32 %v174, %v174
    %v191 = vmul.f32 %v175, %v175
    %v192 = vmul.f32 %v176, %v176
    %v193 = vmul.f32 %v177, %v177
    %v194 = vmul.f32 %v178, %v178
    %v195 = vmul.f32 %v179, %v179
    %v196 = vmul.f32 %v180, %v180
    %v197 = vmul.f32 %v181, %v181
    %v198 = vmul.f32 %v182, %v182
    %v199 = vmul.f32 %v183, %v183
    %v200 = vmul.f32 %v184, %v184
    %v201 = vmul.f32 %v185, %v185
    %v202 = vrot.slane %v186, 4
    %v203 = vadd.f32 %v186, %v202
    %v204 = vrot.slane %v203, 2
    %v205 = vadd.f32 %v203, %v204
    %v206 = vrot.slane %v205, 1
    %v207 = vadd.f32 %v205, %v206
    %v208 = vrot.slane %v187, 4
    %v209 = vadd.f32 %v187, %v208
    %v210 = vrot.slane %v209, 2
    %v211 = vadd.f32 %v209, %v210
    %v212 = vrot.slane %v211, 1
    %v213 = vadd.f32 %v211, %v212
    %v214 = vrot.slane %v188, 4
    %v215 = vadd.f32 %v188, %v214
    %v216 = vrot.slane %v215, 2
    %v217 = vadd.f32 %v215, %v216
    %v218 = vrot.slane %v217, 1
    %v219 = vadd.f32 %v217, %v218
    %v220 = vrot.slane %v189, 4
    %v221 = vadd.f32 %v189, %v220
    %v222 = vrot.slane %v221, 2
    %v223 = vadd.f32 %v221, %v222
    %v224 = vrot.slane %v223, 1
    %v225 = vadd.f32 %v223, %v224
    %v226 = vrot.slane %v190, 4
    %v227 = vadd.f32 %v190, %v226
    %v228 = vrot.slane %v227, 2
    %v229 = vadd.f32 %v227, %v228
    %v230 = vrot.slane %v229, 1
    %v231 = vadd.f32 %v229, %v230
    %v232 = vrot.slane %v191, 4
    %v233 = vadd.f32 %v191, %v232
    %v234 = vrot.slane %v233, 2
    %v235 = vadd.f32 %v233, %v234
    %v236 = vrot.slane %v235, 1
    %v237 = vadd.f32 %v235, %v236
    %v238 = vrot.slane %v192, 4
    %v239 = vadd.f32 %v192, %v238
    %v240 = vrot.slane %v239, 2
    %v241 = vadd.f32 %v239, %v240
    %v242 = vrot.slane %v241, 1
    %v243 = vadd.f32 %v241, %v242
    %v244 = vrot.slane %v193, 4
    %v245 = vadd.f32 %v193, %v244
    %v246 = vrot.slane %v245, 2
    %v247 = vadd.f32 %v245, %v246
    %v248 = vrot.slane %v247, 1
    %v249 = vadd.f32 %v247, %v248
    %v250 = vrot.slane %v194, 4
    %v251 = vadd.f32 %v194, %v250
    %v252 = vrot.slane %v251, 2
    %v253 = vadd.f32 %v251, %v252
    %v254 = vrot.slane %v253, 1
    %v255 = vadd.f32 %v253, %v254
    %v256 = vrot.slane %v195, 4
    %v257 = vadd.f32 %v195, %v256
    %v258 = vrot.slane %v257, 2
    %v259 = vadd.f32 %v257, %v258
    %v260 = vrot.slane %v259, 1
    %v261 = vadd.f32 %v259, %v260
    %v262 = vrot.slane %v196, 4
    %v263 = vadd.f32 %v196, %v262
    %v264 = vrot.slane %v263, 2
    %v265 = vadd.f32 %v263, %v264
    %v266 = vrot.slane %v265, 1
    %v267 = vadd.f32 %v265, %v266
    %v268 = vrot.slane %v197, 4
    %v269 = vadd.f32 %v197, %v268
    %v270 = vrot.slane %v269, 2
    %v271 = vadd.f32 %v269, %v270
    %v272 = vrot.slane %v271, 1
    %v273 = vadd.f32 %v271, %v272
    %v274 = vrot.slane %v198, 4
    %v275 = vadd.f32 %v198, %v274
    %v276 = vrot.slane %v275, 2
    %v277 = vadd.f32 %v275, %v276
    %v278 = vrot.slane %v277, 1
    %v279 = vadd.f32 %v277, %v278
    %v280 = vrot.slane %v199, 4
    %v281 = vadd.f32 %v199, %v280
    %v282 = vrot.slane %v281, 2
    %v283 = vadd.f32 %v281, %v282
    %v284 = vrot.slane %v283, 1
    %v285 = vadd.f32 %v283, %v284
    %v286 = vrot.slane %v200, 4
    %v287 = vadd.f32 %v200, %v286
    %v288 = vrot.slane %v287, 2
    %v289 = vadd.f32 %v287, %v288
    %v290 = vrot.slane %v289, 1
    %v291 = vadd.f32 %v289, %v290
    %v292 = vrot.slane %v201, 4
    %v293 = vadd.f32 %v201, %v292
    %v294 = vrot.slane %v293, 2
    %v295 = vadd.f32 %v293, %v294
    %v296 = vrot.slane %v295, 1
    %v297 = vadd.f32 %v295, %v296
    %v298 = vadd.f32 %v207, 0.0
    %v299 = vadd.f32 %v213, 0.0
    %v300 = vadd.f32 %v219, 0.0
    %v301 = vadd.f32 %v225, 0.0
    %v302 = vadd.f32 %v231, 0.0
    %v303 = vadd.f32 %v237, 0.0
    %v304 = vadd.f32 %v243, 0.0
    %v305 = vadd.f32 %v249, 0.0
    %v306 = vadd.f32 %v255, 0.0
    %v307 = vadd.f32 %v261, 0.0
    %v308 = vadd.f32 %v267, 0.0
    %v309 = vadd.f32 %v273, 0.0
    %v310 = vadd.f32 %v279, 0.0
    %v311 = vadd.f32 %v285, 0.0
    %v312 = vadd.f32 %v291, 0.0
    %v313 = vadd.f32 %v297, 0.0
    %v314 = vrcp.pop 7.0
    %v315 = vmul.f32 %v298, %v314
    %v316 = vmul.f32 %v299, %v314
    %v317 = vmul.f32 %v300, %v314
    %v318 = vmul.f32 %v301, %v314
    %v319 = vmul.f32 %v302, %v314
    %v320 = vmul.f32 %v303, %v314
    %v321 = vmul.f32 %v304, %v314
    %v322 = vmul.f32 %v305, %v314
    %v323 = vmul.f32 %v306, %v314
    %v324 = vmul.f32 %v307, %v314
    %v325 = vmul.f32 %v308, %v314
    %v326 = vmul.f32 %v309, %v314
    %v327 = vmul.f32 %v310, %v314
    %v328 = vmul.f32 %v311, %v314
    %v329 = vmul.f32 %v312, %v314
    %v330 = vmul.f32 %v313, %v314
    %vm347 = vcmask 1041409
    %v348 = vsel %vm347, %v156, %v154
    %vm349 = vcmask 1042434
    %v350 = vsel %vm349, %v158, %v348
    %vm351 = vcmask 1043459
    %v352 = vsel %vm351, %v160, %v350
    %vm353 = vcmask 1044484
    %v354 = vsel %vm353, %v162, %v352
    %vm355 = vcmask 1045509
    %v356 = vsel %vm355, %v164, %v354
    %vm357 = vcmask 1046534
    %v358 = vsel %vm357, %v166, %v356
    %vm359 = vcmask 1047559
    %v360 = vsel %vm359, %v168, %v358
    %v361 = vsel %vm347, %v157, %v155
    %v362 = vsel %vm349, %v159, %v361
    %v363 = vsel %vm351, %v161, %v362
    %v364 = vsel %vm353, %v163, %v363
    %v365 = vsel %vm355, %v165, %v364
    %v366 = vsel %vm357, %v167, %v365
    %v367 = vsel %vm359, %v169, %v366
    %370 = vst [vmem:[#allocation5] sm:$0xff] %v360
    %371 = vst [vmem:[#allocation5 + $0x8] sm:$0xff] %v367
    %v372 = vrsqrt.pop %v315
    %v373 = vmul.f32 %v315, %v372
    %vm374 = vcmp.eq.f32.partialorder %v315, inf
    %v375 = vsel %vm374, %v315, %v373
    %vm376 = vcmp.eq.f32.partialorder %v315, 0.0
    %v377 = vand.u32 %v315, 2147483648
    %v378 = vsel %vm376, %v377, %v375
    %v379 = vrsqrt.pop %v316
    %v380 = vmul.f32 %v316, %v379
    %vm381 = vcmp.eq.f32.partialorder %v316, inf
    %v382 = vsel %vm381, %v316, %v380
    %vm383 = vcmp.eq.f32.partialorder %v316, 0.0
    %v384 = vand.u32 %v316, 2147483648
    %v385 = vsel %vm383, %v384, %v382
    %v386 = vrsqrt.pop %v317
    %v387 = vmul.f32 %v317, %v386
    %vm388 = vcmp.eq.f32.partialorder %v317, inf
    %v389 = vsel %vm388, %v317, %v387
    %vm390 = vcmp.eq.f32.partialorder %v317, 0.0
    %v391 = vand.u32 %v317, 2147483648
    %v392 = vsel %vm390, %v391, %v389
    %v393 = vrsqrt.pop %v318
    %v394 = vmul.f32 %v318, %v393
    %vm395 = vcmp.eq.f32.partialorder %v318, inf
    %v396 = vsel %vm395, %v318, %v394
    %vm397 = vcmp.eq.f32.partialorder %v318, 0.0
    %v398 = vand.u32 %v318, 2147483648
    %v399 = vsel %vm397, %v398, %v396
    %v400 = vrsqrt.pop %v319
    %v401 = vmul.f32 %v319, %v400
    %vm402 = vcmp.eq.f32.partialorder %v319, inf
    %v403 = vsel %vm402, %v319, %v401
    %vm404 = vcmp.eq.f32.partialorder %v319, 0.0
    %v405 = vand.u32 %v319, 2147483648
    %v406 = vsel %vm404, %v405, %v403
    %v407 = vrsqrt.pop %v320
    %v408 = vmul.f32 %v320, %v407
    %vm409 = vcmp.eq.f32.partialorder %v320, inf
    %v410 = vsel %vm409, %v320, %v408
    %vm411 = vcmp.eq.f32.partialorder %v320, 0.0
    %v412 = vand.u32 %v320, 2147483648
    %v413 = vsel %vm411, %v412, %v410
    %v414 = vrsqrt.pop %v321
    %v415 = vmul.f32 %v321, %v414
    %vm416 = vcmp.eq.f32.partialorder %v321, inf
    %v417 = vsel %vm416, %v321, %v415
    %vm418 = vcmp.eq.f32.partialorder %v321, 0.0
    %v419 = vand.u32 %v321, 2147483648
    %v420 = vsel %vm418, %v419, %v417
    %v421 = vrsqrt.pop %v322
    %v422 = vmul.f32 %v322, %v421
    %vm423 = vcmp.eq.f32.partialorder %v322, inf
    %v424 = vsel %vm423, %v322, %v422
    %vm425 = vcmp.eq.f32.partialorder %v322, 0.0
    %v426 = vand.u32 %v322, 2147483648
    %v427 = vsel %vm425, %v426, %v424
    %v428 = vrsqrt.pop %v323
    %v429 = vmul.f32 %v323, %v428
    %vm430 = vcmp.eq.f32.partialorder %v323, inf
    %v431 = vsel %vm430, %v323, %v429
    %vm432 = vcmp.eq.f32.partialorder %v323, 0.0
    %v433 = vand.u32 %v323, 2147483648
    %v434 = vsel %vm432, %v433, %v431
    %v435 = vrsqrt.pop %v324
    %v436 = vmul.f32 %v324, %v435
    %vm437 = vcmp.eq.f32.partialorder %v324, inf
    %v438 = vsel %vm437, %v324, %v436
    %vm439 = vcmp.eq.f32.partialorder %v324, 0.0
    %v440 = vand.u32 %v324, 2147483648
    %v441 = vsel %vm439, %v440, %v438
    %v442 = vrsqrt.pop %v325
    %v443 = vmul.f32 %v325, %v442
    %vm444 = vcmp.eq.f32.partialorder %v325, inf
    %v445 = vsel %vm444, %v325, %v443
    %vm446 = vcmp.eq.f32.partialorder %v325, 0.0
    %v447 = vand.u32 %v325, 2147483648
    %v448 = vsel %vm446, %v447, %v445
    %v449 = vrsqrt.pop %v326
    %v450 = vmul.f32 %v326, %v449
    %vm451 = vcmp.eq.f32.partialorder %v326, inf
    %v452 = vsel %vm451, %v326, %v450
    %vm453 = vcmp.eq.f32.partialorder %v326, 0.0
    %v454 = vand.u32 %v326, 2147483648
    %v455 = vsel %vm453, %v454, %v452
    %v456 = vrsqrt.pop %v327
    %v457 = vmul.f32 %v327, %v456
    %vm458 = vcmp.eq.f32.partialorder %v327, inf
    %v459 = vsel %vm458, %v327, %v457
    %vm460 = vcmp.eq.f32.partialorder %v327, 0.0
    %v461 = vand.u32 %v327, 2147483648
    %v462 = vsel %vm460, %v461, %v459
    %v463 = vrsqrt.pop %v328
    %v464 = vmul.f32 %v328, %v463
    %vm465 = vcmp.eq.f32.partialorder %v328, inf
    %v466 = vsel %vm465, %v328, %v464
    %vm467 = vcmp.eq.f32.partialorder %v328, 0.0
    %v468 = vand.u32 %v328, 2147483648
    %v469 = vsel %vm467, %v468, %v466
    %v470 = vrsqrt.pop %v329
    %v471 = vmul.f32 %v329, %v470
    %vm472 = vcmp.eq.f32.partialorder %v329, inf
    %v473 = vsel %vm472, %v329, %v471
    %vm474 = vcmp.eq.f32.partialorder %v329, 0.0
    %v475 = vand.u32 %v329, 2147483648
    %v476 = vsel %vm474, %v475, %v473
    %v477 = vrsqrt.pop %v330
    %v478 = vmul.f32 %v330, %v477
    %vm479 = vcmp.eq.f32.partialorder %v330, inf
    %v480 = vsel %vm479, %v330, %v478
    %vm481 = vcmp.eq.f32.partialorder %v330, 0.0
    %v482 = vand.u32 %v330, 2147483648
    %v483 = vsel %vm481, %v482, %v480
    %v500 = vsel %vm347, %v392, %v378
    %v501 = vsel %vm349, %v406, %v500
    %v502 = vsel %vm351, %v420, %v501
    %v503 = vsel %vm353, %v434, %v502
    %v504 = vsel %vm355, %v448, %v503
    %v505 = vsel %vm357, %v462, %v504
    %v506 = vsel %vm359, %v476, %v505
    %v507 = vsel %vm347, %v399, %v385
    %v508 = vsel %vm349, %v413, %v507
    %v509 = vsel %vm351, %v427, %v508
    %v510 = vsel %vm353, %v441, %v509
    %v511 = vsel %vm355, %v455, %v510
    %v512 = vsel %vm357, %v469, %v511
    %v513 = vsel %vm359, %v483, %v512
    %516 = vst [vmem:[#allocation6] sm:$0xff] %v506
    %517 = vst [vmem:[#allocation6 + $0x8] sm:$0xff] %v513
    // Predicated region
    $region10: #{mean_std.1} parent=1 // pred_check
      _
    $region11: #{mean_std.1} parent=1 // pred_check_branch
      %519 = sbr.rel (0) target = $region13
    $region12: #{mean_std.1} parent=1 // pred_region
      %s521 = ssub.s32 256, 256
      %522 = vsyncadd [#allocation4], %s521
      %s524 = sshll.u32 [#allocation5], 4
      %s525 = int_to_ptr.vmem [resolvable:$true] %s524
      %527 = dma.vmem_to_hbm [thread:$0]  %s525, 256, %s1, [#allocation4]
    $region13: #{mean_std.1} parent=1 // pred_fallthru
      _
    // Predicated region
    $region14: #{mean_std.1} parent=1 // pred_check
      _
    $region15: #{mean_std.1} parent=1 // pred_check_branch
      %529 = sbr.rel (0) target = $region17
    $region16: #{mean_std.1} parent=1 // pred_region
      %s531 = ssub.s32 256, 256
      %532 = vsyncadd [#allocation7], %s531
      %s534 = sshll.u32 [#allocation6], 4
      %s535 = int_to_ptr.vmem [resolvable:$true] %s534
      %537 = dma.vmem_to_hbm [thread:$0]  %s535, 256, %s2, [#allocation7]
    $region17: #{mean_std.1} parent=1 // pred_fallthru
      _
    // Predicated region
    $region18: #{mean_std.1} parent=1 // pred_check
      _
    $region19: #{mean_std.1} parent=1 // pred_check_branch
      %539 = sbr.rel (0) target = $region21
    $region20: #{mean_std.1} parent=1 // pred_region
      %540 = dma.done [#allocation4], 256
    $region21: #{mean_std.1} parent=1 // pred_fallthru
      _
    // Predicated region
    $region22: #{mean_std.1} parent=1 // pred_check
      _
    $region23: #{mean_std.1} parent=1 // pred_check_branch
      %542 = sbr.rel (0) target = $region25
    $region24: #{mean_std.1} parent=1 // pred_region
      %543 = dma.done [#allocation7], 256
    $region25: #{mean_std.1} parent=1 // pred_fallthru
      _
    %544 = vsyncpa [#allocation3], 1
    %545 = vsyncpa [#allocation4], 1
    %546 = vsyncpa [#allocation7], 1

</llo_original>
